<compile_context>
chip_gen: v7x
topology: tpu7x:2x2x1
jax: 0.10.0
libtpu: 0.0.40
codegen_flags: <defaults>
</compile_context>

<pallas_src>
import functools

import jax
import jax.numpy as jnp
from jax.experimental import pallas as pl
from jax.experimental.pallas import tpu as pltpu

_LANE = 128


def _sine_mlp_kernel(x_ref, w1_ref, b1_ref, w2_ref, b2_ref, w3_ref, b3_ref, o_ref,
                     *, chunk, n_chunks, unroll):
    """Fused 3-layer MLP forward for one batch tile, feature-major layout.

    x_ref:  (1, TB)   f32, batch on lanes
    w1_ref: (H, 1)    f32   b1_ref: (H, 1)
    w2_ref: (H, H)    bf16 (or f32)   b2_ref: (H, 1)
    w3_ref: (H, 1)    f32   b3_ref: (1, 1)
    o_ref:  (1, TB)   f32
    """
    # Weights are tiny; load once per grid step and keep them resident in vregs.
    w1 = w1_ref[...]
    b1 = b1_ref[...]
    w2 = w2_ref[...]
    b2 = b2_ref[...]
    w3 = w3_ref[...]
    b3 = b3_ref[...]

    def body(c, carry):
        off = pl.multiple_of(c * chunk, chunk)
        x = x_ref[:, pl.ds(off, chunk)]                         # (1, chunk)

        # Layer 1 (in_features = 1): pure VPU broadcast multiply-add, no MXU round-trip.
        h1 = jnp.maximum(w1 * x + b1, 0.0)                      # (H, chunk) f32

        # Layer 2: w2 @ h1, contraction over the in-feature axis. bf16 operands keep the
        # MXU at native rate; accumulation stays f32 via preferred_element_type.
        h2 = jax.lax.dot_general(
            w2, h1.astype(w2.dtype),
            dimension_numbers=(((1,), (0,)), ((), ())),
            preferred_element_type=jnp.float32,
        ) + b2                                                  # (H, chunk) f32
        h2 = jnp.maximum(h2, 0.0)

        # Layer 3 (out_features = 1): elementwise mul + sublane (XLU) reduce -> lane-dense row.
        out = jnp.sum(w3 * h2, axis=0, keepdims=True) + b3      # (1, chunk)

        o_ref[:, pl.ds(off, chunk)] = out.astype(o_ref.dtype)
        return carry

    # Chunked inner loop: (H, chunk) temporaries (~10 vregs at chunk=512) never hit VMEM,
    # and the next chunk's MXU stationary load can overlap the previous chunk's VPU/XLU work.
    jax.lax.fori_loop(0, n_chunks, body, 0, unroll=unroll)


@functools.partial(jax.jit, static_argnames=("tile_b", "mxu_bf16"))
def sine_model_forward(x, params, *, tile_b=16384, mxu_bf16=True):
    """x: (N, 1) float32. params: dict in PyTorch [out, in] layout (see init_params)."""
    n, in_dim = x.shape
    assert in_dim == 1
    assert n > 0

    # ---- Tile / grid sizing (batch lives on the lane axis; tiles are 128-lane multiples).
    n_lanes = max(_LANE, pl.cdiv(n, _LANE) * _LANE)
    tile = min(tile_b, n_lanes)
    # v7x has 2 TensorCores: if one tile would cover the whole batch but the batch spans
    # >= 2 lane groups, split into 2 "parallel" grid steps so both cores get work.
    # (On v5e/v6e the extra step only costs ~0.35 us.)
    if tile >= n_lanes and n_lanes >= 2 * _LANE:
        tile = pl.cdiv(n_lanes // _LANE, 2) * _LANE
    tile = max(_LANE, (tile // _LANE) * _LANE)
    n_pad = pl.cdiv(n, tile) * tile
    grid = (n_pad // tile,)

    # In-kernel lane-chunk size: largest power-of-two <= 512 that divides the tile.
    chunk = 512
    while tile % chunk:
        chunk //= 2
    n_chunks = tile // chunk
    unroll = True if n_chunks <= 8 else 4

    # Feature-major input row, zero-padded tail (padded lanes produce harmless values
    # that are sliced off below).
    x_row = jnp.pad(x.reshape(1, n), ((0, 0), (0, n_pad - n)))

    # One-time wrapper-side reshapes/casts so the kernel does zero layout work.
    h = params["w1"].shape[0]                       # hidden width (40 for default structure)
    w1 = params["w1"].reshape(h, 1)
    b1 = params["b1"].reshape(h, 1)
    w2 = params["w2"].astype(jnp.bfloat16) if mxu_bf16 else params["w2"]   # (h, h) [out, in]
    b2 = params["b2"].reshape(h, 1)
    w3 = params["w3"].reshape(h, 1)
    b3 = params["b3"].reshape(1, 1)

    full = lambda a: pl.BlockSpec(a.shape, lambda i: (0, 0))

    kernel = functools.partial(
        _sine_mlp_kernel, chunk=chunk, n_chunks=n_chunks, unroll=unroll)

    out_row = pl.pallas_call(
        kernel,
        out_shape=jax.ShapeDtypeStruct((1, n_pad), x.dtype),
        grid_spec=pltpu.PrefetchScalarGridSpec(
            num_scalar_prefetch=0,
            grid=grid,
            in_specs=[
                pl.BlockSpec((1, tile), lambda i: (0, i)),      # lane-dense x tile
                full(w1), full(b1),
                full(w2), full(b2),
                full(w3), full(b3),
            ],
            out_specs=pl.BlockSpec((1, tile), lambda i: (0, i)),  # lane-dense output
        ),
        compiler_params=pltpu.CompilerParams(
            dimension_semantics=("parallel",),
        ),
    )(x_row, w1, b1, w2, b2, w3, b3)

    return out_row[0, :n].reshape(n, 1)


def _xavier_uniform(key, out_f, in_f, dtype=jnp.float32):
    # torch.nn.init.xavier_uniform_: U(-a, a), a = sqrt(6 / (fan_in + fan_out))
    bound = (6.0 / (in_f + out_f)) ** 0.5
    return jax.random.uniform(key, (out_f, in_f), dtype, minval=-bound, maxval=bound)


def init_params(key):
    k1, k2, k3 = jax.random.split(key, 3)
    return {
        "w1": _xavier_uniform(k1, 40, 1),
        "b1": jnp.zeros((40,), jnp.float32),
        "w2": _xavier_uniform(k2, 40, 40),
        "b2": jnp.zeros((40,), jnp.float32),
        "w3": _xavier_uniform(k3, 1, 40),
        "b3": jnp.zeros((1,), jnp.float32),
    }


def _reference_forward(x, p, mxu_bf16=True):
    """Pure-JAX reference of F.linear chain; layer-2 precision matches the kernel."""
    h1 = jnp.maximum(x @ p["w1"].T + p["b1"], 0.0)
    w2 = p["w2"].astype(jnp.bfloat16) if mxu_bf16 else p["w2"]
    h2 = jax.lax.dot_general(
        h1.astype(w2.dtype), w2,
        dimension_numbers=(((1,), (1,)), ((), ())),
        preferred_element_type=jnp.float32,
    ) + p["b2"]
    h2 = jnp.maximum(h2, 0.0)
    return h2 @ p["w3"].T + p["b3"]


if __name__ == "__main__":
    key = jax.random.PRNGKey(0)
    pkey, xkey, bkey = jax.random.split(key, 3)

    params = init_params(pkey)
    # Non-zero biases (as after a few MAML inner-loop steps) to exercise the bias path.
    kb1, kb2, kb3 = jax.random.split(bkey, 3)
    params["b1"] = 0.1 * jax.random.normal(kb1, (40,), jnp.float32)
    params["b2"] = 0.1 * jax.random.normal(kb2, (40,), jnp.float32)
    params["b3"] = 0.1 * jax.random.normal(kb3, (1,), jnp.float32)

    # Batch of scalar sine inputs; deliberately NOT a multiple of the tile size so the
    # ragged-padding path, the 2-step "parallel" grid and the multi-chunk inner loop all run.
    N = 2000
    x = jax.random.uniform(xkey, (N, 1), jnp.float32, minval=-5.0, maxval=5.0)

    out = jax.block_until_ready(sine_model_forward(x, params))

    # Precision-matched reference (bf16 layer-2 operands, f32 accumulation).
    ref = _reference_forward(x, params, mxu_bf16=True)
    assert out.shape == (N, 1)
    assert jnp.allclose(out, ref, atol=1e-4, rtol=1e-4), "mismatch vs reference"

    print("KERNEL_OK")
</pallas_src>

<mosaic_0001>
module attributes {stable_mosaic.version = 11 : i64} {
  func.func @_sine_mlp_kernel(%arg0: i32, %arg1: memref<1x1024xf32, #tpu.memory_space<vmem>>, %arg2: memref<40x1xf32, #tpu.memory_space<vmem>>, %arg3: memref<40x1xf32, #tpu.memory_space<vmem>>, %arg4: memref<40x40xbf16, #tpu.memory_space<vmem>>, %arg5: memref<40x1xf32, #tpu.memory_space<vmem>>, %arg6: memref<40x1xf32, #tpu.memory_space<vmem>>, %arg7: memref<1x1xf32, #tpu.memory_space<vmem>>, %arg8: memref<1x1024xf32, #tpu.memory_space<vmem>>) attributes {dimension_semantics = [#tpu.dimension_semantics<parallel>], iteration_bounds = array<i64: 2>, scalar_prefetch = 0 : i64, scratch_operands = 0 : i64, tpu.core_type = #tpu.core_type<tc>, window_params = [{transform_indices = @transform_0, window_bounds = array<i64: 1, 1024>}, {pipeline_mode = #tpu.pipeline_mode<synchronous>, transform_indices = @transform_1, window_bounds = array<i64: 40, 1>}, {pipeline_mode = #tpu.pipeline_mode<synchronous>, transform_indices = @transform_2, window_bounds = array<i64: 40, 1>}, {pipeline_mode = #tpu.pipeline_mode<synchronous>, transform_indices = @transform_3, window_bounds = array<i64: 40, 40>}, {pipeline_mode = #tpu.pipeline_mode<synchronous>, transform_indices = @transform_4, window_bounds = array<i64: 40, 1>}, {pipeline_mode = #tpu.pipeline_mode<synchronous>, transform_indices = @transform_5, window_bounds = array<i64: 40, 1>}, {pipeline_mode = #tpu.pipeline_mode<synchronous>, transform_indices = @transform_6, window_bounds = array<i64: 1, 1>}, {transform_indices = @transform_7, window_bounds = array<i64: 1, 1024>}]} {
    %c0 = arith.constant 0 : index
    %c0_0 = arith.constant 0 : index
    %0 = vector.load %arg2[%c0, %c0_0] : memref<40x1xf32, #tpu.memory_space<vmem>>, vector<40x1xf32>
    %c0_1 = arith.constant 0 : index
    %c0_2 = arith.constant 0 : index
    %1 = vector.load %arg3[%c0_1, %c0_2] : memref<40x1xf32, #tpu.memory_space<vmem>>, vector<40x1xf32>
    %c0_3 = arith.constant 0 : index
    %c0_4 = arith.constant 0 : index
    %2 = vector.load %arg4[%c0_3, %c0_4] : memref<40x40xbf16, #tpu.memory_space<vmem>>, vector<40x40xbf16>
    %c0_5 = arith.constant 0 : index
    %c0_6 = arith.constant 0 : index
    %3 = vector.load %arg5[%c0_5, %c0_6] : memref<40x1xf32, #tpu.memory_space<vmem>>, vector<40x1xf32>
    %c0_7 = arith.constant 0 : index
    %c0_8 = arith.constant 0 : index
    %4 = vector.load %arg6[%c0_7, %c0_8] : memref<40x1xf32, #tpu.memory_space<vmem>>, vector<40x1xf32>
    %c0_9 = arith.constant 0 : index
    %c0_10 = arith.constant 0 : index
    %5 = vector.load %arg7[%c0_9, %c0_10] : memref<1x1xf32, #tpu.memory_space<vmem>>, vector<1x1xf32>
    %c0_i32 = arith.constant 0 : i32
    %c512_i32 = arith.constant 512 : i32
    %6 = arith.muli %c0_i32, %c512_i32 : i32
    %7 = tpu.assume_multiple %6, 512 : i32
    %c0_11 = arith.constant 0 : index
    %8 = arith.index_cast %7 : i32 to index
    %9 = vector.load %arg1[%c0_11, %8] : memref<1x1024xf32, #tpu.memory_space<vmem>>, vector<1x512xf32>
    %10 = vector.broadcast %0 : vector<40x1xf32> to vector<40x512xf32>
    %11 = vector.broadcast %9 : vector<1x512xf32> to vector<40x512xf32>
    %12 = arith.mulf %10, %11 : vector<40x512xf32>
    %13 = vector.broadcast %1 : vector<40x1xf32> to vector<40x512xf32>
    %14 = arith.addf %12, %13 : vector<40x512xf32>
    %cst = arith.constant 0.000000e+00 : f32
    %15 = vector.broadcast %cst : f32 to vector<40x512xf32>
    %16 = arith.maximumf %14, %15 : vector<40x512xf32>
    %17 = arith.truncf %16 : vector<40x512xf32> to vector<40x512xbf16>
    %cst_12 = arith.constant dense<0.000000e+00> : vector<40x512xf32>
    %18 = tpu.matmul %2, %17, %cst_12 {dimension_numbers = #tpu.dot_dimension_numbers<[1], [0], [0], [1], [0, 0, 1, 1], [], []>} : vector<40x40xbf16>, vector<40x512xbf16>, vector<40x512xf32> -> vector<40x512xf32>
    %19 = vector.broadcast %3 : vector<40x1xf32> to vector<40x512xf32>
    %20 = arith.addf %18, %19 : vector<40x512xf32>
    %cst_13 = arith.constant 0.000000e+00 : f32
    %21 = vector.broadcast %cst_13 : f32 to vector<40x512xf32>
    %22 = arith.maximumf %20, %21 : vector<40x512xf32>
    %23 = vector.broadcast %4 : vector<40x1xf32> to vector<40x512xf32>
    %24 = arith.mulf %23, %22 : vector<40x512xf32>
    %cst_14 = arith.constant dense<0.000000e+00> : vector<512xf32>
    %25 = vector.multi_reduction <add>, %24, %cst_14 [0] : vector<40x512xf32> to vector<512xf32>
    %26 = vector.shape_cast %25 : vector<512xf32> to vector<1x512xf32>
    %27 = vector.broadcast %5 : vector<1x1xf32> to vector<1x512xf32>
    %28 = arith.addf %26, %27 : vector<1x512xf32>
    %c0_15 = arith.constant 0 : index
    %29 = arith.index_cast %7 : i32 to index
    %30 = vector.load %arg8[%c0_15, %29] : memref<1x1024xf32, #tpu.memory_space<vmem>>, vector<1x512xf32>
    tpu.vector_store %arg8[%c0_15, %29], %28 {strides = array<i32>} : memref<1x1024xf32, #tpu.memory_space<vmem>>, vector<1x512xf32>,
    %c1_i32 = arith.constant 1 : i32
    %c512_i32_16 = arith.constant 512 : i32
    %31 = arith.muli %c1_i32, %c512_i32_16 : i32
    %32 = tpu.assume_multiple %31, 512 : i32
    %c0_17 = arith.constant 0 : index
    %33 = arith.index_cast %32 : i32 to index
    %34 = vector.load %arg1[%c0_17, %33] : memref<1x1024xf32, #tpu.memory_space<vmem>>, vector<1x512xf32>
    %35 = vector.broadcast %0 : vector<40x1xf32> to vector<40x512xf32>
    %36 = vector.broadcast %34 : vector<1x512xf32> to vector<40x512xf32>
    %37 = arith.mulf %35, %36 : vector<40x512xf32>
    %38 = vector.broadcast %1 : vector<40x1xf32> to vector<40x512xf32>
    %39 = arith.addf %37, %38 : vector<40x512xf32>
    %cst_18 = arith.constant 0.000000e+00 : f32
    %40 = vector.broadcast %cst_18 : f32 to vector<40x512xf32>
    %41 = arith.maximumf %39, %40 : vector<40x512xf32>
    %42 = arith.truncf %41 : vector<40x512xf32> to vector<40x512xbf16>
    %cst_19 = arith.constant dense<0.000000e+00> : vector<40x512xf32>
    %43 = tpu.matmul %2, %42, %cst_19 {dimension_numbers = #tpu.dot_dimension_numbers<[1], [0], [0], [1], [0, 0, 1, 1], [], []>} : vector<40x40xbf16>, vector<40x512xbf16>, vector<40x512xf32> -> vector<40x512xf32>
    %44 = vector.broadcast %3 : vector<40x1xf32> to vector<40x512xf32>
    %45 = arith.addf %43, %44 : vector<40x512xf32>
    %cst_20 = arith.constant 0.000000e+00 : f32
    %46 = vector.broadcast %cst_20 : f32 to vector<40x512xf32>
    %47 = arith.maximumf %45, %46 : vector<40x512xf32>
    %48 = vector.broadcast %4 : vector<40x1xf32> to vector<40x512xf32>
    %49 = arith.mulf %48, %47 : vector<40x512xf32>
    %cst_21 = arith.constant dense<0.000000e+00> : vector<512xf32>
    %50 = vector.multi_reduction <add>, %49, %cst_21 [0] : vector<40x512xf32> to vector<512xf32>
    %51 = vector.shape_cast %50 : vector<512xf32> to vector<1x512xf32>
    %52 = vector.broadcast %5 : vector<1x1xf32> to vector<1x512xf32>
    %53 = arith.addf %51, %52 : vector<1x512xf32>
    %c0_22 = arith.constant 0 : index
    %54 = arith.index_cast %32 : i32 to index
    %55 = vector.load %arg8[%c0_22, %54] : memref<1x1024xf32, #tpu.memory_space<vmem>>, vector<1x512xf32>
    tpu.vector_store %arg8[%c0_22, %54], %53 {strides = array<i32>} : memref<1x1024xf32, #tpu.memory_space<vmem>>, vector<1x512xf32>,
    %c2_i32 = arith.constant 2 : i32
    return
  }
  func.func @transform_0(%arg0: i32) -> (i32, i32) {
    %c0_i32 = arith.constant 0 : i32
    %c0_i32_0 = arith.constant 0 : i32
    return %c0_i32, %arg0 : i32, i32
  }
  func.func @transform_1(%arg0: i32) -> (i32, i32) {
    %c0_i32 = arith.constant 0 : i32
    %c0_i32_0 = arith.constant 0 : i32
    %c0_i32_1 = arith.constant 0 : i32
    return %c0_i32, %c0_i32_0 : i32, i32
  }
  func.func @transform_2(%arg0: i32) -> (i32, i32) {
    %c0_i32 = arith.constant 0 : i32
    %c0_i32_0 = arith.constant 0 : i32
    %c0_i32_1 = arith.constant 0 : i32
    return %c0_i32, %c0_i32_0 : i32, i32
  }
  func.func @transform_3(%arg0: i32) -> (i32, i32) {
    %c0_i32 = arith.constant 0 : i32
    %c0_i32_0 = arith.constant 0 : i32
    %c0_i32_1 = arith.constant 0 : i32
    return %c0_i32, %c0_i32_0 : i32, i32
  }
  func.func @transform_4(%arg0: i32) -> (i32, i32) {
    %c0_i32 = arith.constant 0 : i32
    %c0_i32_0 = arith.constant 0 : i32
    %c0_i32_1 = arith.constant 0 : i32
    return %c0_i32, %c0_i32_0 : i32, i32
  }
  func.func @transform_5(%arg0: i32) -> (i32, i32) {
    %c0_i32 = arith.constant 0 : i32
    %c0_i32_0 = arith.constant 0 : i32
    %c0_i32_1 = arith.constant 0 : i32
    return %c0_i32, %c0_i32_0 : i32, i32
  }
  func.func @transform_6(%arg0: i32) -> (i32, i32) {
    %c0_i32 = arith.constant 0 : i32
    %c0_i32_0 = arith.constant 0 : i32
    %c0_i32_1 = arith.constant 0 : i32
    return %c0_i32, %c0_i32_0 : i32, i32
  }
  func.func @transform_7(%arg0: i32) -> (i32, i32) {
    %c0_i32 = arith.constant 0 : i32
    %c0_i32_0 = arith.constant 0 : i32
    return %c0_i32, %arg0 : i32, i32
  }
}

</mosaic_0001>

<llo_original>
// kernel: sine_model_forward.1
$region0: #{sine_model_forward.1}
  #allocation0 [shape = 'u32[]', space=smem, size = 0x4, offset = 0x4, fixed_abs, tag = 'smem constant byte address 0x4 - core index']
  #allocation1 [shape = 'u32[144,128]{1,0:T(1,128)}', space=vmem, size = 0x12000, scoped, tag = 'internal scratch']
  #allocation2 [shape = 'f32[1,1]{1,0:T(1,128)S(1)}', space=vmem, size = 0x200, scoped, tag = 'scoped memory for sine_model_forward.1']
  %s0 = inlined_call_operand.vmem [shape: f32[1,2048], index: 0, kind: input, shape index: {}]
  %s1 = inlined_call_operand.vmem [shape: f32[40,1], index: 1, kind: input, shape index: {}]
  %s2 = inlined_call_operand.vmem [shape: f32[40,1], index: 2, kind: input, shape index: {}]
  %s3 = inlined_call_operand.vmem [shape: bf16[40,40], index: 3, kind: input, shape index: {}]
  %s4 = inlined_call_operand.vmem [shape: f32[40,1], index: 4, kind: input, shape index: {}]
  %s5 = inlined_call_operand.vmem [shape: f32[40,1], index: 5, kind: input, shape index: {}]
  %s6 = inlined_call_operand.<no memory space> [shape: f32[1,1], index: 6, kind: input, shape index: {}]
  %s7 = inlined_call_operand.vmem [shape: f32[1,2048], index: 7, kind: output, shape index: {}]
  %s8 = sld [smem:[#allocation0]]
  $region61: #{sine_model_forward.1} parent=0
    _
  %s10 = ssub.s32 1, %s8
  %s11 = scalar_select 0, %s10, %s8
  %v12 = vstv %s6
  %13 = vst [vmem:[#allocation2] sm:$0x1] %v12
  loop: start=0, step=1, limit=4
  $region2: #{sine_model_forward.1} parent=0 // loop_pre_header
    _
  $region3: #{sine_model_forward.1} parent=0 // loop_header
    %s15 = sphi 0, %s19
    %p16 = scmp.ge.s32.totalorder %s15, 4
    %s25 = sphi 0, %s27
    %s28 = sphi 0, %s25
    %s29 = sphi 0, %s28
    %s45 = sphi 0, %s29
    %s49 = sphi 0, %s49
    %s51 = sphi 0, %s49
    %s52 = sphi 0, %s51
    %s66 = sphi 0, %s52
    %s70 = sphi 0, %s70
    %s72 = sphi 0, %s70
    %s73 = sphi 0, %s72
    %s87 = sphi 0, %s73
    %s91 = sphi 0, %s91
    %s93 = sphi 0, %s91
    %s94 = sphi 0, %s93
    %s108 = sphi 0, %s94
    %s112 = sphi 0, %s112
    %s114 = sphi 0, %s112
    %s115 = sphi 0, %s114
    %s129 = sphi 0, %s115
    %s133 = sphi 0, %s133
    %s135 = sphi 0, %s133
    %s136 = sphi 0, %s135
    %s150 = sphi 0, %s136
    %s154 = sphi 0, %s154
    %s156 = sphi 0, %s154
    %s157 = sphi 0, %s156
    %s171 = sphi 0, %s157
    %s177 = sphi 0, %s179
    %s180 = sphi 0, %s177
    %s181 = sphi 0, %s180
    %s197 = sphi 0, %s181
  $region4: #{sine_model_forward.1} parent=0 // loop_header_branch
    %18 = sbr.rel (%p16) target = $region8
  $region5: #{sine_model_forward.1} parent=0 // loop_body
    %s20 = ssub.s32 %s15, 1
    %s21 = ssub.s32 %s15, 2
    %s22 = sadd.s32 %s15, 1
    %s23 = ssub.s32 %s15, %s22
    %p24 = scmp.eq.s32.totalorder %s23, 0
    %s26 = sadd.s32 %s25, 1
    %s27 = scalar_select %p24, %s25, %s26
    %p30 = pneg %p24
    %p31 = scmp.eq.s32.totalorder %s15, 1
    %p32 = por %p30, %p31
    %p33 = scmp.ne.s32.totalorder %s25, %s28
    %p34 = scmp.eq.s32.totalorder %s15, 0
    %p35 = por %p33, %p34
    %p36 = scmp.ne.s32.totalorder %s25, %s28
    %p37 = scmp.eq.s32.totalorder %s20, 1
    %p38 = por %p36, %p37
    %p39 = scmp.ne.s32.totalorder %s28, %s29
    %p40 = scmp.eq.s32.totalorder %s20, 0
    %p41 = por %p39, %p40
    %p42 = scmp.ne.s32.totalorder %s28, %s29
    %p43 = scmp.eq.s32.totalorder %s21, 1
    %p44 = por %p42, %p43
    %p46 = scmp.ne.s32.totalorder %s29, %s45
    %p47 = scmp.eq.s32.totalorder %s21, 0
    %p48 = por %p46, %p47
    %s50 = sadd.s32 %s49, 1
    %p53 = scmp.eq.s32.totalorder %s15, 1
    %p54 = scmp.ne.s32.totalorder %s49, %s51
    %p55 = scmp.eq.s32.totalorder %s15, 0
    %p56 = por %p54, %p55
    %p57 = scmp.ne.s32.totalorder %s49, %s51
    %p58 = scmp.eq.s32.totalorder %s20, 1
    %p59 = por %p57, %p58
    %p60 = scmp.ne.s32.totalorder %s51, %s52
    %p61 = scmp.eq.s32.totalorder %s20, 0
    %p62 = por %p60, %p61
    %p63 = scmp.ne.s32.totalorder %s51, %s52
    %p64 = scmp.eq.s32.totalorder %s21, 1
    %p65 = por %p63, %p64
    %p67 = scmp.ne.s32.totalorder %s52, %s66
    %p68 = scmp.eq.s32.totalorder %s21, 0
    %p69 = por %p67, %p68
    %s71 = sadd.s32 %s70, 1
    %p74 = scmp.eq.s32.totalorder %s15, 1
    %p75 = scmp.ne.s32.totalorder %s70, %s72
    %p76 = scmp.eq.s32.totalorder %s15, 0
    %p77 = por %p75, %p76
    %p78 = scmp.ne.s32.totalorder %s70, %s72
    %p79 = scmp.eq.s32.totalorder %s20, 1
    %p80 = por %p78, %p79
    %p81 = scmp.ne.s32.totalorder %s72, %s73
    %p82 = scmp.eq.s32.totalorder %s20, 0
    %p83 = por %p81, %p82
    %p84 = scmp.ne.s32.totalorder %s72, %s73
    %p85 = scmp.eq.s32.totalorder %s21, 1
    %p86 = por %p84, %p85
    %p88 = scmp.ne.s32.totalorder %s73, %s87
    %p89 = scmp.eq.s32.totalorder %s21, 0
    %p90 = por %p88, %p89
    %s92 = sadd.s32 %s91, 1
    %p95 = scmp.eq.s32.totalorder %s15, 1
    %p96 = scmp.ne.s32.totalorder %s91, %s93
    %p97 = scmp.eq.s32.totalorder %s15, 0
    %p98 = por %p96, %p97
    %p99 = scmp.ne.s32.totalorder %s91, %s93
    %p100 = scmp.eq.s32.totalorder %s20, 1
    %p101 = por %p99, %p100
    %p102 = scmp.ne.s32.totalorder %s93, %s94
    %p103 = scmp.eq.s32.totalorder %s20, 0
    %p104 = por %p102, %p103
    %p105 = scmp.ne.s32.totalorder %s93, %s94
    %p106 = scmp.eq.s32.totalorder %s21, 1
    %p107 = por %p105, %p106
    %p109 = scmp.ne.s32.totalorder %s94, %s108
    %p110 = scmp.eq.s32.totalorder %s21, 0
    %p111 = por %p109, %p110
    %s113 = sadd.s32 %s112, 1
    %p116 = scmp.eq.s32.totalorder %s15, 1
    %p117 = scmp.ne.s32.totalorder %s112, %s114
    %p118 = scmp.eq.s32.totalorder %s15, 0
    %p119 = por %p117, %p118
    %p120 = scmp.ne.s32.totalorder %s112, %s114
    %p121 = scmp.eq.s32.totalorder %s20, 1
    %p122 = por %p120, %p121
    %p123 = scmp.ne.s32.totalorder %s114, %s115
    %p124 = scmp.eq.s32.totalorder %s20, 0
    %p125 = por %p123, %p124
    %p126 = scmp.ne.s32.totalorder %s114, %s115
    %p127 = scmp.eq.s32.totalorder %s21, 1
    %p128 = por %p126, %p127
    %p130 = scmp.ne.s32.totalorder %s115, %s129
    %p131 = scmp.eq.s32.totalorder %s21, 0
    %p132 = por %p130, %p131
    %s134 = sadd.s32 %s133, 1
    %p137 = scmp.eq.s32.totalorder %s15, 1
    %p138 = scmp.ne.s32.totalorder %s133, %s135
    %p139 = scmp.eq.s32.totalorder %s15, 0
    %p140 = por %p138, %p139
    %p141 = scmp.ne.s32.totalorder %s133, %s135
    %p142 = scmp.eq.s32.totalorder %s20, 1
    %p143 = por %p141, %p142
    %p144 = scmp.ne.s32.totalorder %s135, %s136
    %p145 = scmp.eq.s32.totalorder %s20, 0
    %p146 = por %p144, %p145
    %p147 = scmp.ne.s32.totalorder %s135, %s136
    %p148 = scmp.eq.s32.totalorder %s21, 1
    %p149 = por %p147, %p148
    %p151 = scmp.ne.s32.totalorder %s136, %s150
    %p152 = scmp.eq.s32.totalorder %s21, 0
    %p153 = por %p151, %p152
    %s155 = sadd.s32 %s154, 1
    %p158 = scmp.eq.s32.totalorder %s15, 1
    %p159 = scmp.ne.s32.totalorder %s154, %s156
    %p160 = scmp.eq.s32.totalorder %s15, 0
    %p161 = por %p159, %p160
    %p162 = scmp.ne.s32.totalorder %s154, %s156
    %p163 = scmp.eq.s32.totalorder %s20, 1
    %p164 = por %p162, %p163
    %p165 = scmp.ne.s32.totalorder %s156, %s157
    %p166 = scmp.eq.s32.totalorder %s20, 0
    %p167 = por %p165, %p166
    %p168 = scmp.ne.s32.totalorder %s156, %s157
    %p169 = scmp.eq.s32.totalorder %s21, 1
    %p170 = por %p168, %p169
    %p172 = scmp.ne.s32.totalorder %s157, %s171
    %p173 = scmp.eq.s32.totalorder %s21, 0
    %p174 = por %p172, %p173
    %s175 = ssub.s32 %s15, %s22
    %p176 = scmp.eq.s32.totalorder %s175, 0
    %s178 = sadd.s32 %s177, 1
    %s179 = scalar_select %p176, %s177, %s178
    %p182 = pneg %p176
    %p183 = scmp.eq.s32.totalorder %s15, 1
    %p184 = por %p182, %p183
    %p185 = scmp.ne.s32.totalorder %s177, %s180
    %p186 = scmp.eq.s32.totalorder %s15, 0
    %p187 = por %p185, %p186
    %p188 = scmp.ne.s32.totalorder %s177, %s180
    %p189 = scmp.eq.s32.totalorder %s20, 1
    %p190 = por %p188, %p189
    %p191 = scmp.ne.s32.totalorder %s180, %s181
    %p192 = scmp.eq.s32.totalorder %s20, 0
    %p193 = por %p191, %p192
    %p194 = scmp.ne.s32.totalorder %s180, %s181
    %p195 = scmp.eq.s32.totalorder %s21, 1
    %p196 = por %p194, %p195
    %p198 = scmp.ne.s32.totalorder %s181, %s197
    %p199 = scmp.eq.s32.totalorder %s21, 0
    %p200 = por %p198, %p199
    %p201 = scmp.le.s32.totalorder 1, %s15
    %p202 = scmp.lt.s32.totalorder %s15, 3
    %p203 = pnand %p201, %p202
    %p204 = pneg %p203
    // Predicated region
    $region9: #{sine_model_forward.1} parent=5 // pred_check
      _
    $region10: #{sine_model_forward.1} parent=5 // pred_check_branch
      %206 = sbr.rel (%p203) target = $region12
    $region11: #{sine_model_forward.1} parent=5 // pred_region
      %s207 = ssub.s32 %s15, 1
      // Predicated region
      $region13: #{sine_model_forward.1} parent=11 // pred_check
        %p208 = pneg %p62
      $region14: #{sine_model_forward.1} parent=11 // pred_check_branch
        %210 = sbr.rel (%p208) target = $region16
      $region15: #{sine_model_forward.1} parent=11 // pred_region
        _
      $region16: #{sine_model_forward.1} parent=11 // pred_fallthru
        _
      // Predicated region
      $region17: #{sine_model_forward.1} parent=11 // pred_check
        %p211 = pneg %p83
      $region18: #{sine_model_forward.1} parent=11 // pred_check_branch
        %213 = sbr.rel (%p211) target = $region20
      $region19: #{sine_model_forward.1} parent=11 // pred_region
        _
      $region20: #{sine_model_forward.1} parent=11 // pred_fallthru
        _
      // Predicated region
      $region21: #{sine_model_forward.1} parent=11 // pred_check
        %p214 = pneg %p104
      $region22: #{sine_model_forward.1} parent=11 // pred_check_branch
        %216 = sbr.rel (%p214) target = $region24
      $region23: #{sine_model_forward.1} parent=11 // pred_region
        _
      $region24: #{sine_model_forward.1} parent=11 // pred_fallthru
        _
      // Predicated region
      $region25: #{sine_model_forward.1} parent=11 // pred_check
        %p217 = pneg %p125
      $region26: #{sine_model_forward.1} parent=11 // pred_check_branch
        %219 = sbr.rel (%p217) target = $region28
      $region27: #{sine_model_forward.1} parent=11 // pred_region
        _
      $region28: #{sine_model_forward.1} parent=11 // pred_fallthru
        _
      // Predicated region
      $region29: #{sine_model_forward.1} parent=11 // pred_check
        %p220 = pneg %p146
      $region30: #{sine_model_forward.1} parent=11 // pred_check_branch
        %222 = sbr.rel (%p220) target = $region32
      $region31: #{sine_model_forward.1} parent=11 // pred_region
        _
      $region32: #{sine_model_forward.1} parent=11 // pred_fallthru
        _
      // Predicated region
      $region33: #{sine_model_forward.1} parent=11 // pred_check
        %p223 = pneg %p167
      $region34: #{sine_model_forward.1} parent=11 // pred_check_branch
        %225 = sbr.rel (%p223) target = $region36
      $region35: #{sine_model_forward.1} parent=11 // pred_region
        _
      $region36: #{sine_model_forward.1} parent=11 // pred_fallthru
        _
    $region12: #{sine_model_forward.1} parent=5 // pred_fallthru
      _
    %p226 = scmp.lt.s32.totalorder %s15, 2
    // Predicated region
    $region37: #{sine_model_forward.1} parent=5 // pred_check
      %p227 = pneg %p226
    $region38: #{sine_model_forward.1} parent=5 // pred_check_branch
      %229 = sbr.rel (%p227) target = $region40
    $region39: #{sine_model_forward.1} parent=5 // pred_region
      // Predicated region
      $region41: #{sine_model_forward.1} parent=39 // pred_check
        %p230 = pneg %p35
      $region42: #{sine_model_forward.1} parent=39 // pred_check_branch
        %232 = sbr.rel (%p230) target = $region44
      $region43: #{sine_model_forward.1} parent=39 // pred_region
        %s233 = smul.u32 8, %s15
        %p234 = scmp.lt.s32.totalorder %s233, 15
        %s235 = scalar_select %p234, %s233, 15
        %s236 = scalar_lea.vmem %s0, %s235
        %s237 = smul.u32 8, %s15
      $region44: #{sine_model_forward.1} parent=39 // pred_fallthru
        _
    $region40: #{sine_model_forward.1} parent=5 // pred_fallthru
      _
    %p238 = scmp.le.s32.totalorder 1, %s15
    %p239 = scmp.lt.s32.totalorder %s15, 3
    %p240 = pnand %p238, %p239
    %p241 = pneg %p240
    // Predicated region
    $region45: #{sine_model_forward.1} parent=5 // pred_check
      _
    $region46: #{sine_model_forward.1} parent=5 // pred_check_branch
      %243 = sbr.rel (%p240) target = $region48
    $region47: #{sine_model_forward.1} parent=5 // pred_region
      %s244 = ssub.s32 %s15, 1
      %s245 = smul.u32 8, %s20
      %p246 = scmp.lt.s32.totalorder %s245, 15
      %s247 = scalar_select %p246, %s245, 15
      %s248 = scalar_lea.vmem %s0, %s247
      %p249 = pneg %p41
      %p250 = pneg %p38
      %p251 = pneg %p62
      %p252 = pneg %p59
      %p253 = pneg %p83
      %p254 = pneg %p80
      %p255 = pneg %p104
      %p256 = pneg %p101
      %p257 = pneg %p125
      %p258 = pneg %p122
      %p259 = pneg %p146
      %p260 = pneg %p143
      %p261 = pneg %p167
      %p262 = pneg %p164
      %p263 = pneg %p193
      %p264 = pneg %p190
      %s265 = smul.u32 8, %s20
      %p266 = scmp.lt.s32.totalorder %s265, 15
      %s267 = scalar_select %p266, %s265, 15
      %s268 = scalar_lea.vmem %s7, %s267
      %s269 = smul.u32 8, %s20
      %p270 = scmp.lt.s32.totalorder %s269, 15
      %s271 = scalar_select %p270, %s269, 15
      %s272 = scalar_lea.vmem %s0, %s271
      %s273 = smul.u32 8, %s20
      %s274 = smul.u32 8, %s20
      %p275 = scmp.lt.s32.totalorder %s274, 15
      %s276 = scalar_select %p275, %s274, 15
      %s277 = scalar_lea.vmem %s7, %s276
      %s278 = smul.u32 8, %s20
      %v280 = vld [vmem:[%s1] sm:$0xff]
      %v281 = vld [vmem:[%s1 + $0x8] sm:$0xff]
      %v282 = vld [vmem:[%s1 + $0x10] sm:$0xff]
      %v283 = vld [vmem:[%s1 + $0x18] sm:$0xff]
      %v284 = vld [vmem:[%s1 + $0x20] sm:$0xff]
      %v285 = vld [vmem:[%s2] sm:$0xff]
      %v286 = vld [vmem:[%s2 + $0x8] sm:$0xff]
      %v287 = vld [vmem:[%s2 + $0x10] sm:$0xff]
      %v288 = vld [vmem:[%s2 + $0x18] sm:$0xff]
      %v289 = vld [vmem:[%s2 + $0x20] sm:$0xff]
      %v290 = vld [vmem:[%s3] sm:$0xf]
      %v291 = vld [vmem:[%s3 + $0x4] sm:$0xf]
      %v292 = vld [vmem:[%s3 + $0x8] sm:$0xf]
      %v293 = vld [vmem:[%s3 + $0xc] sm:$0xf]
      %v294 = vld [vmem:[%s3 + $0x10] sm:$0xf]
      %v295 = vld [vmem:[%s4] sm:$0xff]
      %v296 = vld [vmem:[%s4 + $0x8] sm:$0xff]
      %v297 = vld [vmem:[%s4 + $0x10] sm:$0xff]
      %v298 = vld [vmem:[%s4 + $0x18] sm:$0xff]
      %v299 = vld [vmem:[%s4 + $0x20] sm:$0xff]
      %v300 = vld [vmem:[%s5] sm:$0xff]
      %v301 = vld [vmem:[%s5 + $0x8] sm:$0xff]
      %v302 = vld [vmem:[%s5 + $0x10] sm:$0xff]
      %v303 = vld [vmem:[%s5 + $0x18] sm:$0xff]
      %v304 = vld [vmem:[%s5 + $0x20] sm:$0xff]
      %v305 = vld [vmem:[#allocation2] sm:$0x1]
      %v306 = vld [vmem:[%s272] sm:$0xf]
      %308 = vset.pattern.permute.xlu0 0
      %309 = vperm.xlu0 %308, %v280
      %v310 = vpop.permute.xlu0 %309
      %313 = vset.pattern.permute.xlu0 0
      %314 = vperm.xlu0 %313, %v281
      %v315 = vpop.permute.xlu0 %314
      %318 = vset.pattern.permute.xlu0 0
      %319 = vperm.xlu0 %318, %v282
      %v320 = vpop.permute.xlu0 %319
      %323 = vset.pattern.permute.xlu0 0
      %324 = vperm.xlu0 %323, %v283
      %v325 = vpop.permute.xlu0 %324
      %328 = vset.pattern.permute.xlu0 0
      %329 = vperm.xlu0 %328, %v284
      %v330 = vpop.permute.xlu0 %329
      %v333 = vlaneseq
      %v334 = vshrl.u32 %v333, 7
      %v335 = vsub.s32 0, %v334
      %v336 = vrot.slane %v306, %v335
      %v337 = vlaneseq
      %v338 = vshrl.u32 %v337, 7
      %v339 = vsub.s32 1, %v338
      %v340 = vrot.slane %v306, %v339
      %v341 = vlaneseq
      %v342 = vshrl.u32 %v341, 7
      %v343 = vsub.s32 2, %v342
      %v344 = vrot.slane %v306, %v343
      %v345 = vlaneseq
      %v346 = vshrl.u32 %v345, 7
      %v347 = vsub.s32 3, %v346
      %v348 = vrot.slane %v306, %v347
      %v353 = vmul.f32 %v310, %v336
      %v354 = vmul.f32 %v310, %v340
      %v355 = vmul.f32 %v310, %v344
      %v356 = vmul.f32 %v310, %v348
      %v357 = vmul.f32 %v315, %v336
      %v358 = vmul.f32 %v315, %v340
      %v359 = vmul.f32 %v315, %v344
      %v360 = vmul.f32 %v315, %v348
      %v361 = vmul.f32 %v320, %v336
      %v362 = vmul.f32 %v320, %v340
      %v363 = vmul.f32 %v320, %v344
      %v364 = vmul.f32 %v320, %v348
      %v365 = vmul.f32 %v325, %v336
      %v366 = vmul.f32 %v325, %v340
      %v367 = vmul.f32 %v325, %v344
      %v368 = vmul.f32 %v325, %v348
      %v369 = vmul.f32 %v330, %v336
      %v370 = vmul.f32 %v330, %v340
      %v371 = vmul.f32 %v330, %v344
      %v372 = vmul.f32 %v330, %v348
      %374 = vset.pattern.permute.xlu0 0
      %375 = vperm.xlu0 %374, %v285
      %v376 = vpop.permute.xlu0 %375
      %379 = vset.pattern.permute.xlu0 0
      %380 = vperm.xlu0 %379, %v286
      %v381 = vpop.permute.xlu0 %380
      %384 = vset.pattern.permute.xlu0 0
      %385 = vperm.xlu0 %384, %v287
      %v386 = vpop.permute.xlu0 %385
      %389 = vset.pattern.permute.xlu0 0
      %390 = vperm.xlu0 %389, %v288
      %v391 = vpop.permute.xlu0 %390
      %394 = vset.pattern.permute.xlu0 0
      %395 = vperm.xlu0 %394, %v289
      %v396 = vpop.permute.xlu0 %395
      %v398 = vadd.f32 %v353, %v376
      %v399 = vadd.f32 %v354, %v376
      %v400 = vadd.f32 %v355, %v376
      %v401 = vadd.f32 %v356, %v376
      %v402 = vadd.f32 %v357, %v381
      %v403 = vadd.f32 %v358, %v381
      %v404 = vadd.f32 %v359, %v381
      %v405 = vadd.f32 %v360, %v381
      %v406 = vadd.f32 %v361, %v386
      %v407 = vadd.f32 %v362, %v386
      %v408 = vadd.f32 %v363, %v386
      %v409 = vadd.f32 %v364, %v386
      %v410 = vadd.f32 %v365, %v391
      %v411 = vadd.f32 %v366, %v391
      %v412 = vadd.f32 %v367, %v391
      %v413 = vadd.f32 %v368, %v391
      %v414 = vadd.f32 %v369, %v396
      %v415 = vadd.f32 %v370, %v396
      %v416 = vadd.f32 %v371, %v396
      %v417 = vadd.f32 %v372, %v396
      %v418 = vmax.f32 %v398, 0.0
      %v419 = vmax.f32 %v399, 0.0
      %v420 = vmax.f32 %v400, 0.0
      %v421 = vmax.f32 %v401, 0.0
      %v422 = vmax.f32 %v402, 0.0
      %v423 = vmax.f32 %v403, 0.0
      %v424 = vmax.f32 %v404, 0.0
      %v425 = vmax.f32 %v405, 0.0
      %v426 = vmax.f32 %v406, 0.0
      %v427 = vmax.f32 %v407, 0.0
      %v428 = vmax.f32 %v408, 0.0
      %v429 = vmax.f32 %v409, 0.0
      %v430 = vmax.f32 %v410, 0.0
      %v431 = vmax.f32 %v411, 0.0
      %v432 = vmax.f32 %v412, 0.0
      %v433 = vmax.f32 %v413, 0.0
      %v434 = vmax.f32 %v414, 0.0
      %v435 = vmax.f32 %v415, 0.0
      %v436 = vmax.f32 %v416, 0.0
      %v437 = vmax.f32 %v417, 0.0
      %v438 = vpack.c.bf16 %v422, %v418
      %v439 = vpack.c.bf16 %v423, %v419
      %v440 = vpack.c.bf16 %v424, %v420
      %v441 = vpack.c.bf16 %v425, %v421
      %v442 = vpack.c.bf16 %v430, %v426
      %v443 = vpack.c.bf16 %v431, %v427
      %v444 = vpack.c.bf16 %v432, %v428
      %v445 = vpack.c.bf16 %v433, %v429
      %v446 = vpack.c.bf16 %v434, %v434
      %v447 = vpack.c.bf16 %v435, %v435
      %v448 = vpack.c.bf16 %v436, %v436
      %v449 = vpack.c.bf16 %v437, %v437
      %451 = vset.pattern.permute.xlu0 0
      %452 = vperm.xlu0 %451, %v295
      %v453 = vpop.permute.xlu0 %452
      %456 = vset.pattern.permute.xlu0 0
      %457 = vperm.xlu0 %456, %v296
      %v458 = vpop.permute.xlu0 %457
      %461 = vset.pattern.permute.xlu0 0
      %462 = vperm.xlu0 %461, %v297
      %v463 = vpop.permute.xlu0 %462
      %466 = vset.pattern.permute.xlu0 0
      %467 = vperm.xlu0 %466, %v298
      %v468 = vpop.permute.xlu0 %467
      %471 = vset.pattern.permute.xlu0 0
      %472 = vperm.xlu0 %471, %v299
      %v473 = vpop.permute.xlu0 %472
      %v480 = vunpack.c.l.b16 %v290
      %v481 = vunpack.c.l.b16 %v291
      %v482 = vunpack.c.l.b16 %v292
      %v483 = vunpack.c.l.b16 %v293
      %v484 = vunpack.c.l.b16 %v294
      %v485 = vpack.c.b16 %v481, %v480
      %v486 = vpack.c.b16 %v483, %v482
      %v487 = vpack.c.b16 %v484, %v484
      %vm488 = vcmask 326656
      %v490 = vsel %vm488, %v485, 0
      %v493 = vsel %vm488, %v486, 0
      %v496 = vsel %vm488, %v487, 0
      %vm498 = vcmask 1043456
      %v500 = vsel %vm498, %v446, 0
      %v503 = vsel %vm498, %v447, 0
      %v506 = vsel %vm498, %v448, 0
      %v509 = vsel %vm498, %v449, 0
      %511 = vmatprep.subr.bf16.mxu0 %v439
      %512 = vmatpush1.bf16.msra.mxu0 %v438
      %513 = vmatprep.subr.bf16.mxu0 %v443
      %514 = vmatpush1.bf16.msra.mxu0 %v442
      %515 = vmatprep.subr.bf16.mxu0 %v503
      %516 = vmatpush1.bf16.msra.mxu0 %v500
      %517 = vmatprep.subr.bf16.mxu0 0
      %518 = vmatpush1.bf16.msra.mxu0 0
      %519 = vmatprep.subr.bf16.mxu0 0
      %520 = vmatpush1.bf16.msra.mxu0 0
      %521 = vmatprep.subr.bf16.mxu0 0
      %522 = vmatpush1.bf16.msra.mxu0 0
      %523 = vmatprep.subr.bf16.mxu0 0
      %524 = vmatpush1.bf16.msra.mxu0 0
      %525 = vmatprep.subr.bf16.mxu0 0
      %526 = vmatpush1.bf16.msra.mxu0 0
      %527 = vmatprep.subr.bf16.mxu0 0
      %528 = vmatpush1.bf16.msra.mxu0 0
      %529 = vmatprep.subr.bf16.mxu0 0
      %530 = vmatpush1.bf16.msra.mxu0 0
      %531 = vmatprep.subr.bf16.mxu0 0
      %532 = vmatpush1.bf16.msra.mxu0 0
      %533 = vmatprep.subr.bf16.mxu0 0
      %534 = vmatpush1.bf16.msra.mxu0 0
      %535 = vmatprep.subr.bf16.mxu0 0
      %536 = vmatpush1.bf16.msra.mxu0 0
      %537 = vmatprep.subr.bf16.mxu0 0
      %538 = vmatpush1.bf16.msra.mxu0 0
      %539 = vmatprep.subr.bf16.mxu0 0
      %540 = vmatpush1.bf16.msra.mxu0 0
      %541 = vmatprep.subr.bf16.mxu0 0
      %542 = vmatpush1.bf16.msra.mxu0 0
      %543 = vmatprep.mubr.bf16.mxu0 0
      %544 = vmatmul.mubr.bf16.gmra.mrb[0].mxu0 %v490
      %v545 = vpop.f32.mrb[0].mxu0
      %v546 = vadd.f32 %v453, %v545
      %v547 = vpop.f32.mrb[0].mxu0
      %v548 = vadd.f32 %v453, %v547
      %v549 = vpop.f32.mrb[0].mxu0
      %v550 = vadd.f32 %v458, %v549
      %v551 = vpop.f32.mrb[0].mxu0
      %v552 = vadd.f32 %v458, %v551
      %553 = vmatprep.mubr.bf16.mxu0 0
      %554 = vmatmul.mubr.bf16.gmra.mrb[0].mxu0 %v493
      %v555 = vpop.f32.mrb[0].mxu0
      %v556 = vadd.f32 %v463, %v555
      %v557 = vpop.f32.mrb[0].mxu0
      %v558 = vadd.f32 %v463, %v557
      %v559 = vpop.f32.mrb[0].mxu0
      %v560 = vadd.f32 %v468, %v559
      %v561 = vpop.f32.mrb[0].mxu0
      %v562 = vadd.f32 %v468, %v561
      %563 = vmatprep.mubr.bf16.mxu0 0
      %564 = vmatmul.mubr.bf16.gmra.mrb[0].mxu0 %v496
      %v565 = vpop.f32.mrb[0].mxu0
      %v566 = vadd.f32 %v473, %v565
      %v567 = vpop.f32.mrb[0].mxu0
      %v568 = vadd.f32 %v473, %v567
      %v569 = vpop.f32.mrb[0].mxu0
      %v570 = vpop.f32.mrb[0].mxu0
      %571 = vdwg.mxu0
      %572 = vmatprep.subr.bf16.mxu0 %v441
      %573 = vmatpush1.bf16.msra.mxu0 %v440
      %574 = vmatprep.subr.bf16.mxu0 %v445
      %575 = vmatpush1.bf16.msra.mxu0 %v444
      %576 = vmatprep.subr.bf16.mxu0 %v509
      %577 = vmatpush1.bf16.msra.mxu0 %v506
      %578 = vmatprep.subr.bf16.mxu0 0
      %579 = vmatpush1.bf16.msra.mxu0 0
      %580 = vmatprep.subr.bf16.mxu0 0
      %581 = vmatpush1.bf16.msra.mxu0 0
      %582 = vmatprep.subr.bf16.mxu0 0
      %583 = vmatpush1.bf16.msra.mxu0 0
      %584 = vmatprep.subr.bf16.mxu0 0
      %585 = vmatpush1.bf16.msra.mxu0 0
      %586 = vmatprep.subr.bf16.mxu0 0
      %587 = vmatpush1.bf16.msra.mxu0 0
      %588 = vmatprep.subr.bf16.mxu0 0
      %589 = vmatpush1.bf16.msra.mxu0 0
      %590 = vmatprep.subr.bf16.mxu0 0
      %591 = vmatpush1.bf16.msra.mxu0 0
      %592 = vmatprep.subr.bf16.mxu0 0
      %593 = vmatpush1.bf16.msra.mxu0 0
      %594 = vmatprep.subr.bf16.mxu0 0
      %595 = vmatpush1.bf16.msra.mxu0 0
      %596 = vmatprep.subr.bf16.mxu0 0
      %597 = vmatpush1.bf16.msra.mxu0 0
      %598 = vmatprep.subr.bf16.mxu0 0
      %599 = vmatpush1.bf16.msra.mxu0 0
      %600 = vmatprep.subr.bf16.mxu0 0
      %601 = vmatpush1.bf16.msra.mxu0 0
      %602 = vmatprep.subr.bf16.mxu0 0
      %603 = vmatpush1.bf16.msra.mxu0 0
      %604 = vmatprep.mubr.bf16.mxu0 0
      %605 = vmatmul.mubr.bf16.gmra.mrb[0].mxu0 %v490
      %v606 = vpop.f32.mrb[0].mxu0
      %v607 = vadd.f32 %v453, %v606
      %v608 = vpop.f32.mrb[0].mxu0
      %v609 = vadd.f32 %v453, %v608
      %v610 = vpop.f32.mrb[0].mxu0
      %v611 = vadd.f32 %v458, %v610
      %v612 = vpop.f32.mrb[0].mxu0
      %v613 = vadd.f32 %v458, %v612
      %614 = vmatprep.mubr.bf16.mxu0 0
      %615 = vmatmul.mubr.bf16.gmra.mrb[0].mxu0 %v493
      %v616 = vpop.f32.mrb[0].mxu0
      %v617 = vadd.f32 %v463, %v616
      %v618 = vpop.f32.mrb[0].mxu0
      %v619 = vadd.f32 %v463, %v618
      %v620 = vpop.f32.mrb[0].mxu0
      %v621 = vadd.f32 %v468, %v620
      %v622 = vpop.f32.mrb[0].mxu0
      %v623 = vadd.f32 %v468, %v622
      %624 = vmatprep.mubr.bf16.mxu0 0
      %625 = vmatmul.mubr.bf16.gmra.mrb[0].mxu0 %v496
      %v626 = vpop.f32.mrb[0].mxu0
      %v627 = vadd.f32 %v473, %v626
      %v628 = vpop.f32.mrb[0].mxu0
      %v629 = vadd.f32 %v473, %v628
      %v630 = vpop.f32.mrb[0].mxu0
      %v631 = vpop.f32.mrb[0].mxu0
      %632 = vdwg.mxu0
      %v633 = vmax.f32 %v546, 0.0
      %v634 = vmax.f32 %v548, 0.0
      %v635 = vmax.f32 %v607, 0.0
      %v636 = vmax.f32 %v609, 0.0
      %v637 = vmax.f32 %v550, 0.0
      %v638 = vmax.f32 %v552, 0.0
      %v639 = vmax.f32 %v611, 0.0
      %v640 = vmax.f32 %v613, 0.0
      %v641 = vmax.f32 %v556, 0.0
      %v642 = vmax.f32 %v558, 0.0
      %v643 = vmax.f32 %v617, 0.0
      %v644 = vmax.f32 %v619, 0.0
      %v645 = vmax.f32 %v560, 0.0
      %v646 = vmax.f32 %v562, 0.0
      %v647 = vmax.f32 %v621, 0.0
      %v648 = vmax.f32 %v623, 0.0
      %v649 = vmax.f32 %v566, 0.0
      %v650 = vmax.f32 %v568, 0.0
      %v651 = vmax.f32 %v627, 0.0
      %v652 = vmax.f32 %v629, 0.0
      %654 = vset.pattern.permute.xlu0 0
      %655 = vperm.xlu0 %654, %v300
      %v656 = vpop.permute.xlu0 %655
      %659 = vset.pattern.permute.xlu0 0
      %660 = vperm.xlu0 %659, %v301
      %v661 = vpop.permute.xlu0 %660
      %664 = vset.pattern.permute.xlu0 0
      %665 = vperm.xlu0 %664, %v302
      %v666 = vpop.permute.xlu0 %665
      %669 = vset.pattern.permute.xlu0 0
      %670 = vperm.xlu0 %669, %v303
      %v671 = vpop.permute.xlu0 %670
      %674 = vset.pattern.permute.xlu0 0
      %675 = vperm.xlu0 %674, %v304
      %v676 = vpop.permute.xlu0 %675
      %v678 = vmul.f32 %v656, %v633
      %v679 = vmul.f32 %v656, %v634
      %v680 = vmul.f32 %v656, %v635
      %v681 = vmul.f32 %v656, %v636
      %v682 = vmul.f32 %v661, %v637
      %v683 = vmul.f32 %v661, %v638
      %v684 = vmul.f32 %v661, %v639
      %v685 = vmul.f32 %v661, %v640
      %v686 = vmul.f32 %v666, %v641
      %v687 = vmul.f32 %v666, %v642
      %v688 = vmul.f32 %v666, %v643
      %v689 = vmul.f32 %v666, %v644
      %v690 = vmul.f32 %v671, %v645
      %v691 = vmul.f32 %v671, %v646
      %v692 = vmul.f32 %v671, %v647
      %v693 = vmul.f32 %v671, %v648
      %v694 = vmul.f32 %v676, %v649
      %v695 = vmul.f32 %v676, %v650
      %v696 = vmul.f32 %v676, %v651
      %v697 = vmul.f32 %v676, %v652
      %v698 = vadd.f32 %v678, %v682
      %v699 = vadd.f32 %v698, %v686
      %v700 = vadd.f32 %v699, %v690
      %v701 = vadd.f32 %v700, %v694
      %v702 = vrot.slane %v701, 4
      %v703 = vadd.f32 %v701, %v702
      %v704 = vrot.slane %v703, 2
      %v705 = vadd.f32 %v703, %v704
      %v706 = vrot.slane %v705, 1
      %v707 = vadd.f32 %v705, %v706
      %v708 = vadd.f32 %v679, %v683
      %v709 = vadd.f32 %v708, %v687
      %v710 = vadd.f32 %v709, %v691
      %v711 = vadd.f32 %v710, %v695
      %v712 = vrot.slane %v711, 4
      %v713 = vadd.f32 %v711, %v712
      %v714 = vrot.slane %v713, 2
      %v715 = vadd.f32 %v713, %v714
      %v716 = vrot.slane %v715, 1
      %v717 = vadd.f32 %v715, %v716
      %v718 = vadd.f32 %v680, %v684
      %v719 = vadd.f32 %v718, %v688
      %v720 = vadd.f32 %v719, %v692
      %v721 = vadd.f32 %v720, %v696
      %v722 = vrot.slane %v721, 4
      %v723 = vadd.f32 %v721, %v722
      %v724 = vrot.slane %v723, 2
      %v725 = vadd.f32 %v723, %v724
      %v726 = vrot.slane %v725, 1
      %v727 = vadd.f32 %v725, %v726
      %v728 = vadd.f32 %v681, %v685
      %v729 = vadd.f32 %v728, %v689
      %v730 = vadd.f32 %v729, %v693
      %v731 = vadd.f32 %v730, %v697
      %v732 = vrot.slane %v731, 4
      %v733 = vadd.f32 %v731, %v732
      %v734 = vrot.slane %v733, 2
      %v735 = vadd.f32 %v733, %v734
      %v736 = vrot.slane %v735, 1
      %v737 = vadd.f32 %v735, %v736
      %739 = vset.pattern.permute.xlu0 0
      %740 = vperm.xlu0 %739, %v305
      %v741 = vpop.permute.xlu0 %740
      %v743 = vlaneseq
      %v744 = vshrl.u32 %v743, 7
      %v745 = vsub.s32 0, %v744
      %v746 = vrot.slane %v741, %v745
      %v747 = vadd.f32 %v707, %v746
      %v748 = vadd.f32 %v717, %v746
      %v749 = vadd.f32 %v727, %v746
      %v750 = vadd.f32 %v737, %v746
      %v755 = vcombine.low %v747, %v748
      %v756 = vcombine.low %v749, %v750
      %v758 = vunpack.c.l.s4 1966171168
      %v759 = vunpack.c.0.s8 %v758
      %v760 = vlaneseq
      %v761 = vshrl.u32 %v760, 7
      %v762 = vsub.s32 %v759, %v761
      %v763 = vrot.slane %v755, %v762
      %v765 = vunpack.c.l.s4 1966171168
      %v766 = vunpack.c.0.s8 %v765
      %v767 = vlaneseq
      %v768 = vshrl.u32 %v767, 7
      %v769 = vsub.s32 %v766, %v768
      %v770 = vrot.slane %v756, %v769
      %v771 = vcombine.low %v763, %v770
      %v773 = vunpack.c.l.s4 1966171168
      %v774 = vunpack.c.0.s8 %v773
      %v775 = vlaneseq
      %v776 = vshrl.u32 %v775, 7
      %v777 = vsub.s32 %v774, %v776
      %v778 = vrot.slane %v771, %v777
      %v780 = vlaneseq
      %vm781 = vcmp.ge.s32.totalorder %v780, 0
      %vm782 = vcmp.lt.s32.totalorder %v780, 512
      %vm783 = vmand %vm781, %vm782
      %784 = vst.msk [vmem:[%s277] sm:$0xf] %vm783, %v778
      %s785 = scalar_lea.vmem %s272, 4
      %v786 = vld [vmem:[%s785] sm:$0xf]
      %v788 = vlaneseq
      %v789 = vshrl.u32 %v788, 7
      %v790 = vsub.s32 0, %v789
      %v791 = vrot.slane %v786, %v790
      %v792 = vlaneseq
      %v793 = vshrl.u32 %v792, 7
      %v794 = vsub.s32 1, %v793
      %v795 = vrot.slane %v786, %v794
      %v796 = vlaneseq
      %v797 = vshrl.u32 %v796, 7
      %v798 = vsub.s32 2, %v797
      %v799 = vrot.slane %v786, %v798
      %v800 = vlaneseq
      %v801 = vshrl.u32 %v800, 7
      %v802 = vsub.s32 3, %v801
      %v803 = vrot.slane %v786, %v802
      %v808 = vmul.f32 %v310, %v791
      %v809 = vmul.f32 %v310, %v795
      %v810 = vmul.f32 %v310, %v799
      %v811 = vmul.f32 %v310, %v803
      %v812 = vmul.f32 %v315, %v791
      %v813 = vmul.f32 %v315, %v795
      %v814 = vmul.f32 %v315, %v799
      %v815 = vmul.f32 %v315, %v803
      %v816 = vmul.f32 %v320, %v791
      %v817 = vmul.f32 %v320, %v795
      %v818 = vmul.f32 %v320, %v799
      %v819 = vmul.f32 %v320, %v803
      %v820 = vmul.f32 %v325, %v791
      %v821 = vmul.f32 %v325, %v795
      %v822 = vmul.f32 %v325, %v799
      %v823 = vmul.f32 %v325, %v803
      %v824 = vmul.f32 %v330, %v791
      %v825 = vmul.f32 %v330, %v795
      %v826 = vmul.f32 %v330, %v799
      %v827 = vmul.f32 %v330, %v803
      %v828 = vadd.f32 %v808, %v376
      %v829 = vadd.f32 %v809, %v376
      %v830 = vadd.f32 %v810, %v376
      %v831 = vadd.f32 %v811, %v376
      %v832 = vadd.f32 %v812, %v381
      %v833 = vadd.f32 %v813, %v381
      %v834 = vadd.f32 %v814, %v381
      %v835 = vadd.f32 %v815, %v381
      %v836 = vadd.f32 %v816, %v386
      %v837 = vadd.f32 %v817, %v386
      %v838 = vadd.f32 %v818, %v386
      %v839 = vadd.f32 %v819, %v386
      %v840 = vadd.f32 %v820, %v391
      %v841 = vadd.f32 %v821, %v391
      %v842 = vadd.f32 %v822, %v391
      %v843 = vadd.f32 %v823, %v391
      %v844 = vadd.f32 %v824, %v396
      %v845 = vadd.f32 %v825, %v396
      %v846 = vadd.f32 %v826, %v396
      %v847 = vadd.f32 %v827, %v396
      %v848 = vmax.f32 %v828, 0.0
      %v849 = vmax.f32 %v829, 0.0
      %v850 = vmax.f32 %v830, 0.0
      %v851 = vmax.f32 %v831, 0.0
      %v852 = vmax.f32 %v832, 0.0
      %v853 = vmax.f32 %v833, 0.0
      %v854 = vmax.f32 %v834, 0.0
      %v855 = vmax.f32 %v835, 0.0
      %v856 = vmax.f32 %v836, 0.0
      %v857 = vmax.f32 %v837, 0.0
      %v858 = vmax.f32 %v838, 0.0
      %v859 = vmax.f32 %v839, 0.0
      %v860 = vmax.f32 %v840, 0.0
      %v861 = vmax.f32 %v841, 0.0
      %v862 = vmax.f32 %v842, 0.0
      %v863 = vmax.f32 %v843, 0.0
      %v864 = vmax.f32 %v844, 0.0
      %v865 = vmax.f32 %v845, 0.0
      %v866 = vmax.f32 %v846, 0.0
      %v867 = vmax.f32 %v847, 0.0
      %v868 = vpack.c.bf16 %v852, %v848
      %v869 = vpack.c.bf16 %v853, %v849
      %v870 = vpack.c.bf16 %v854, %v850
      %v871 = vpack.c.bf16 %v855, %v851
      %v872 = vpack.c.bf16 %v860, %v856
      %v873 = vpack.c.bf16 %v861, %v857
      %v874 = vpack.c.bf16 %v862, %v858
      %v875 = vpack.c.bf16 %v863, %v859
      %v876 = vpack.c.bf16 %v864, %v864
      %v877 = vpack.c.bf16 %v865, %v865
      %v878 = vpack.c.bf16 %v866, %v866
      %v879 = vpack.c.bf16 %v867, %v867
      %v881 = vsel %vm498, %v876, 0
      %v884 = vsel %vm498, %v877, 0
      %v887 = vsel %vm498, %v878, 0
      %v890 = vsel %vm498, %v879, 0
      %892 = vmatprep.subr.bf16.mxu0 %v869
      %893 = vmatpush1.bf16.msra.mxu0 %v868
      %894 = vmatprep.subr.bf16.mxu0 %v873
      %895 = vmatpush1.bf16.msra.mxu0 %v872
      %896 = vmatprep.subr.bf16.mxu0 %v884
      %897 = vmatpush1.bf16.msra.mxu0 %v881
      %898 = vmatprep.subr.bf16.mxu0 0
      %899 = vmatpush1.bf16.msra.mxu0 0
      %900 = vmatprep.subr.bf16.mxu0 0
      %901 = vmatpush1.bf16.msra.mxu0 0
      %902 = vmatprep.subr.bf16.mxu0 0
      %903 = vmatpush1.bf16.msra.mxu0 0
      %904 = vmatprep.subr.bf16.mxu0 0
      %905 = vmatpush1.bf16.msra.mxu0 0
      %906 = vmatprep.subr.bf16.mxu0 0
      %907 = vmatpush1.bf16.msra.mxu0 0
      %908 = vmatprep.subr.bf16.mxu0 0
      %909 = vmatpush1.bf16.msra.mxu0 0
      %910 = vmatprep.subr.bf16.mxu0 0
      %911 = vmatpush1.bf16.msra.mxu0 0
      %912 = vmatprep.subr.bf16.mxu0 0
      %913 = vmatpush1.bf16.msra.mxu0 0
      %914 = vmatprep.subr.bf16.mxu0 0
      %915 = vmatpush1.bf16.msra.mxu0 0
      %916 = vmatprep.subr.bf16.mxu0 0
      %917 = vmatpush1.bf16.msra.mxu0 0
      %918 = vmatprep.subr.bf16.mxu0 0
      %919 = vmatpush1.bf16.msra.mxu0 0
      %920 = vmatprep.subr.bf16.mxu0 0
      %921 = vmatpush1.bf16.msra.mxu0 0
      %922 = vmatprep.subr.bf16.mxu0 0
      %923 = vmatpush1.bf16.msra.mxu0 0
      %924 = vmatprep.mubr.bf16.mxu0 0
      %925 = vmatmul.mubr.bf16.gmra.mrb[0].mxu0 %v490
      %v926 = vpop.f32.mrb[0].mxu0
      %v927 = vadd.f32 %v453, %v926
      %v928 = vpop.f32.mrb[0].mxu0
      %v929 = vadd.f32 %v453, %v928
      %v930 = vpop.f32.mrb[0].mxu0
      %v931 = vadd.f32 %v458, %v930
      %v932 = vpop.f32.mrb[0].mxu0
      %v933 = vadd.f32 %v458, %v932
      %934 = vmatprep.mubr.bf16.mxu0 0
      %935 = vmatmul.mubr.bf16.gmra.mrb[0].mxu0 %v493
      %v936 = vpop.f32.mrb[0].mxu0
      %v937 = vadd.f32 %v463, %v936
      %v938 = vpop.f32.mrb[0].mxu0
      %v939 = vadd.f32 %v463, %v938
      %v940 = vpop.f32.mrb[0].mxu0
      %v941 = vadd.f32 %v468, %v940
      %v942 = vpop.f32.mrb[0].mxu0
      %v943 = vadd.f32 %v468, %v942
      %944 = vmatprep.mubr.bf16.mxu0 0
      %945 = vmatmul.mubr.bf16.gmra.mrb[0].mxu0 %v496
      %v946 = vpop.f32.mrb[0].mxu0
      %v947 = vadd.f32 %v473, %v946
      %v948 = vpop.f32.mrb[0].mxu0
      %v949 = vadd.f32 %v473, %v948
      %v950 = vpop.f32.mrb[0].mxu0
      %v951 = vpop.f32.mrb[0].mxu0
      %952 = vdwg.mxu0
      %953 = vmatprep.subr.bf16.mxu0 %v871
      %954 = vmatpush1.bf16.msra.mxu0 %v870
      %955 = vmatprep.subr.bf16.mxu0 %v875
      %956 = vmatpush1.bf16.msra.mxu0 %v874
      %957 = vmatprep.subr.bf16.mxu0 %v890
      %958 = vmatpush1.bf16.msra.mxu0 %v887
      %959 = vmatprep.subr.bf16.mxu0 0
      %960 = vmatpush1.bf16.msra.mxu0 0
      %961 = vmatprep.subr.bf16.mxu0 0
      %962 = vmatpush1.bf16.msra.mxu0 0
      %963 = vmatprep.subr.bf16.mxu0 0
      %964 = vmatpush1.bf16.msra.mxu0 0
      %965 = vmatprep.subr.bf16.mxu0 0
      %966 = vmatpush1.bf16.msra.mxu0 0
      %967 = vmatprep.subr.bf16.mxu0 0
      %968 = vmatpush1.bf16.msra.mxu0 0
      %969 = vmatprep.subr.bf16.mxu0 0
      %970 = vmatpush1.bf16.msra.mxu0 0
      %971 = vmatprep.subr.bf16.mxu0 0
      %972 = vmatpush1.bf16.msra.mxu0 0
      %973 = vmatprep.subr.bf16.mxu0 0
      %974 = vmatpush1.bf16.msra.mxu0 0
      %975 = vmatprep.subr.bf16.mxu0 0
      %976 = vmatpush1.bf16.msra.mxu0 0
      %977 = vmatprep.subr.bf16.mxu0 0
      %978 = vmatpush1.bf16.msra.mxu0 0
      %979 = vmatprep.subr.bf16.mxu0 0
      %980 = vmatpush1.bf16.msra.mxu0 0
      %981 = vmatprep.subr.bf16.mxu0 0
      %982 = vmatpush1.bf16.msra.mxu0 0
      %983 = vmatprep.subr.bf16.mxu0 0
      %984 = vmatpush1.bf16.msra.mxu0 0
      %985 = vmatprep.mubr.bf16.mxu0 0
      %986 = vmatmul.mubr.bf16.gmra.mrb[0].mxu0 %v490
      %v987 = vpop.f32.mrb[0].mxu0
      %v988 = vadd.f32 %v453, %v987
      %v989 = vpop.f32.mrb[0].mxu0
      %v990 = vadd.f32 %v453, %v989
      %v991 = vpop.f32.mrb[0].mxu0
      %v992 = vadd.f32 %v458, %v991
      %v993 = vpop.f32.mrb[0].mxu0
      %v994 = vadd.f32 %v458, %v993
      %995 = vmatprep.mubr.bf16.mxu0 0
      %996 = vmatmul.mubr.bf16.gmra.mrb[0].mxu0 %v493
      %v997 = vpop.f32.mrb[0].mxu0
      %v998 = vadd.f32 %v463, %v997
      %v999 = vpop.f32.mrb[0].mxu0
      %v1000 = vadd.f32 %v463, %v999
      %v1001 = vpop.f32.mrb[0].mxu0
      %v1002 = vadd.f32 %v468, %v1001
      %v1003 = vpop.f32.mrb[0].mxu0
      %v1004 = vadd.f32 %v468, %v1003
      %1005 = vmatprep.mubr.bf16.mxu0 0
      %1006 = vmatmul.mubr.bf16.gmra.mrb[0].mxu0 %v496
      %v1007 = vpop.f32.mrb[0].mxu0
      %v1008 = vadd.f32 %v473, %v1007
      %v1009 = vpop.f32.mrb[0].mxu0
      %v1010 = vadd.f32 %v473, %v1009
      %v1011 = vpop.f32.mrb[0].mxu0
      %v1012 = vpop.f32.mrb[0].mxu0
      %1013 = vdwg.mxu0
      %v1014 = vmax.f32 %v927, 0.0
      %v1015 = vmax.f32 %v929, 0.0
      %v1016 = vmax.f32 %v988, 0.0
      %v1017 = vmax.f32 %v990, 0.0
      %v1018 = vmax.f32 %v931, 0.0
      %v1019 = vmax.f32 %v933, 0.0
      %v1020 = vmax.f32 %v992, 0.0
      %v1021 = vmax.f32 %v994, 0.0
      %v1022 = vmax.f32 %v937, 0.0
      %v1023 = vmax.f32 %v939, 0.0
      %v1024 = vmax.f32 %v998, 0.0
      %v1025 = vmax.f32 %v1000, 0.0
      %v1026 = vmax.f32 %v941, 0.0
      %v1027 = vmax.f32 %v943, 0.0
      %v1028 = vmax.f32 %v1002, 0.0
      %v1029 = vmax.f32 %v1004, 0.0
      %v1030 = vmax.f32 %v947, 0.0
      %v1031 = vmax.f32 %v949, 0.0
      %v1032 = vmax.f32 %v1008, 0.0
      %v1033 = vmax.f32 %v1010, 0.0
      %v1034 = vmul.f32 %v656, %v1014
      %v1035 = vmul.f32 %v656, %v1015
      %v1036 = vmul.f32 %v656, %v1016
      %v1037 = vmul.f32 %v656, %v1017
      %v1038 = vmul.f32 %v661, %v1018
      %v1039 = vmul.f32 %v661, %v1019
      %v1040 = vmul.f32 %v661, %v1020
      %v1041 = vmul.f32 %v661, %v1021
      %v1042 = vmul.f32 %v666, %v1022
      %v1043 = vmul.f32 %v666, %v1023
      %v1044 = vmul.f32 %v666, %v1024
      %v1045 = vmul.f32 %v666, %v1025
      %v1046 = vmul.f32 %v671, %v1026
      %v1047 = vmul.f32 %v671, %v1027
      %v1048 = vmul.f32 %v671, %v1028
      %v1049 = vmul.f32 %v671, %v1029
      %v1050 = vmul.f32 %v676, %v1030
      %v1051 = vmul.f32 %v676, %v1031
      %v1052 = vmul.f32 %v676, %v1032
      %v1053 = vmul.f32 %v676, %v1033
      %v1054 = vadd.f32 %v1034, %v1038
      %v1055 = vadd.f32 %v1054, %v1042
      %v1056 = vadd.f32 %v1055, %v1046
      %v1057 = vadd.f32 %v1056, %v1050
      %v1058 = vrot.slane %v1057, 4
      %v1059 = vadd.f32 %v1057, %v1058
      %v1060 = vrot.slane %v1059, 2
      %v1061 = vadd.f32 %v1059, %v1060
      %v1062 = vrot.slane %v1061, 1
      %v1063 = vadd.f32 %v1061, %v1062
      %v1064 = vadd.f32 %v1035, %v1039
      %v1065 = vadd.f32 %v1064, %v1043
      %v1066 = vadd.f32 %v1065, %v1047
      %v1067 = vadd.f32 %v1066, %v1051
      %v1068 = vrot.slane %v1067, 4
      %v1069 = vadd.f32 %v1067, %v1068
      %v1070 = vrot.slane %v1069, 2
      %v1071 = vadd.f32 %v1069, %v1070
      %v1072 = vrot.slane %v1071, 1
      %v1073 = vadd.f32 %v1071, %v1072
      %v1074 = vadd.f32 %v1036, %v1040
      %v1075 = vadd.f32 %v1074, %v1044
      %v1076 = vadd.f32 %v1075, %v1048
      %v1077 = vadd.f32 %v1076, %v1052
      %v1078 = vrot.slane %v1077, 4
      %v1079 = vadd.f32 %v1077, %v1078
      %v1080 = vrot.slane %v1079, 2
      %v1081 = vadd.f32 %v1079, %v1080
      %v1082 = vrot.slane %v1081, 1
      %v1083 = vadd.f32 %v1081, %v1082
      %v1084 = vadd.f32 %v1037, %v1041
      %v1085 = vadd.f32 %v1084, %v1045
      %v1086 = vadd.f32 %v1085, %v1049
      %v1087 = vadd.f32 %v1086, %v1053
      %v1088 = vrot.slane %v1087, 4
      %v1089 = vadd.f32 %v1087, %v1088
      %v1090 = vrot.slane %v1089, 2
      %v1091 = vadd.f32 %v1089, %v1090
      %v1092 = vrot.slane %v1091, 1
      %v1093 = vadd.f32 %v1091, %v1092
      %v1094 = vadd.f32 %v1063, %v746
      %v1095 = vadd.f32 %v1073, %v746
      %v1096 = vadd.f32 %v1083, %v746
      %v1097 = vadd.f32 %v1093, %v746
      %v1102 = vcombine.low %v1094, %v1095
      %v1103 = vcombine.low %v1096, %v1097
      %v1105 = vunpack.c.l.s4 1966171168
      %v1106 = vunpack.c.0.s8 %v1105
      %v1107 = vlaneseq
      %v1108 = vshrl.u32 %v1107, 7
      %v1109 = vsub.s32 %v1106, %v1108
      %v1110 = vrot.slane %v1102, %v1109
      %v1112 = vunpack.c.l.s4 1966171168
      %v1113 = vunpack.c.0.s8 %v1112
      %v1114 = vlaneseq
      %v1115 = vshrl.u32 %v1114, 7
      %v1116 = vsub.s32 %v1113, %v1115
      %v1117 = vrot.slane %v1103, %v1116
      %v1118 = vcombine.low %v1110, %v1117
      %v1120 = vunpack.c.l.s4 1966171168
      %v1121 = vunpack.c.0.s8 %v1120
      %v1122 = vlaneseq
      %v1123 = vshrl.u32 %v1122, 7
      %v1124 = vsub.s32 %v1121, %v1123
      %v1125 = vrot.slane %v1118, %v1124
      %s1127 = scalar_lea.vmem %s277, 4
      %1128 = vst.msk [vmem:[%s1127] sm:$0xf] %vm783, %v1125
      %s1129 = smul.u32 8, %s20
      %p1130 = scmp.lt.s32.totalorder %s1129, 15
      %s1131 = scalar_select %p1130, %s1129, 15
      %s1132 = scalar_lea.vmem %s7, %s1131
      // Predicated region
      $region49: #{sine_model_forward.1} parent=47 // pred_check
        %p1133 = pneg %p190
      $region50: #{sine_model_forward.1} parent=47 // pred_check_branch
        %1135 = sbr.rel (%p1133) target = $region52
      $region51: #{sine_model_forward.1} parent=47 // pred_region
        %s1136 = smul.u32 8, %s20
      $region52: #{sine_model_forward.1} parent=47 // pred_fallthru
        _
    $region48: #{sine_model_forward.1} parent=5 // pred_fallthru
      _
    %p1137 = scmp.le.s32.totalorder 2, %s15
    // Predicated region
    $region53: #{sine_model_forward.1} parent=5 // pred_check
      %p1138 = pneg %p1137
    $region54: #{sine_model_forward.1} parent=5 // pred_check_branch
      %1140 = sbr.rel (%p1138) target = $region56
    $region55: #{sine_model_forward.1} parent=5 // pred_region
      %s1141 = ssub.s32 %s15, 2
      // Predicated region
      $region57: #{sine_model_forward.1} parent=55 // pred_check
        %p1142 = pneg %p196
      $region58: #{sine_model_forward.1} parent=55 // pred_check_branch
        %1144 = sbr.rel (%p1142) target = $region60
      $region59: #{sine_model_forward.1} parent=55 // pred_region
        %s1145 = smul.u32 8, %s21
        %p1146 = scmp.lt.s32.totalorder %s1145, 15
        %s1147 = scalar_select %p1146, %s1145, 15
        %s1148 = scalar_lea.vmem %s7, %s1147
      $region60: #{sine_model_forward.1} parent=55 // pred_fallthru
        _
    $region56: #{sine_model_forward.1} parent=5 // pred_fallthru
      _
  $region6: #{sine_model_forward.1} parent=0 // loop_footer
    %s19 = sadd.s32 1, %s15
  $region7: #{sine_model_forward.1} parent=0 // loop_footer_branch
    %14 = sbr.rel target = $region3
  $region8: #{sine_model_forward.1} parent=0 // loop_exit
    _

</llo_original>
